<compile_context>
chip_gen: v5e
topology: v5e:2x2
jax: 0.10.0
libtpu: 0.0.40
codegen_flags: <defaults>
</compile_context>

<pallas_src>
import functools
import math

import jax
import jax.numpy as jnp
from jax import lax
from jax.experimental import pallas as pl
from jax.experimental.pallas import tpu as pltpu


# ----------------------------------------------------------------------------
# Kernel: one (batch element, destination-pixel tile) per grid step.
# ----------------------------------------------------------------------------
def _backwarp_kernel(row0_ref, img_ref, flow_ref, out_ref, *, H, W, tp, Hb):
    """
    row0_ref: (num_tiles,) int32 in SMEM — source-row band start per tile
    img_ref : (1, C, H, W)  full source frame (resident across dst tiles)
    flow_ref: (1, 2, tp)    flow for the tp destination pixels of this tile
    out_ref : (1, C, tp)    warped output for those pixels
    """
    C = img_ref.shape[1]
    t = pl.program_id(1)

    # ---- per-destination-pixel coordinates on lane-dense (1, tp) rows ------
    flow = flow_ref[0].astype(jnp.float32)                   # (2, tp)
    u = flow[0:1, :]                                         # horizontal flow
    v = flow[1:2, :]                                         # vertical flow

    # Flattened destination pixel index p = h*W + w for this tile.
    p_i = lax.broadcasted_iota(jnp.int32, (1, tp), 1) + t * tp
    p = p_i.astype(jnp.float32)                               # exact for HW < 2**24
    w_f = jnp.float32(W)
    gy = jnp.floor(p / w_f)
    # Exact divmod correction: f32 division may round across an integer.
    gy = jnp.where(gy * w_f > p, gy - 1.0, gy)
    gy = jnp.where((gy + 1.0) * w_f <= p, gy + 1.0, gy)
    gx = p - gy * w_f

    # grid_sample(align_corners=False) un-normalisation collapses to a shift:
    # ix = gx + u - 0.5, iy = gy + v - 0.5 (no divide round trip).
    ix = gx + u - 0.5
    iy = gy + v - 0.5
    x0f = jnp.floor(ix)
    y0f = jnp.floor(iy)
    fx = ix - x0f                                             # (1, tp) f32
    fy = iy - y0f
    x0 = x0f.astype(jnp.int32)
    y0 = y0f.astype(jnp.int32)

    # ---- separable one-hot interpolation weights ---------------------------
    # Source coordinate runs along sublanes, destination pixel along lanes.
    # Out-of-range corners match no source index -> zeros padding for free.
    row0 = row0_ref[t]                                        # band start (0 if no band)
    src_x = lax.broadcasted_iota(jnp.int32, (W, tp), 0)
    src_y = lax.broadcasted_iota(jnp.int32, (Hb, tp), 0) + row0
    wx = jnp.where(src_x == x0, 1.0 - fx,
                   jnp.where(src_x == x0 + 1, fx, 0.0))       # (W,  tp) f32
    wy = jnp.where(src_y == y0, 1.0 - fy,
                   jnp.where(src_y == y0 + 1, fy, 0.0))       # (Hb, tp) f32

    # ---- sample: one fused MXU matmul over x, one f32 VPU/XLU reduce over y
    if Hb == H:
        img3 = img_ref[0]                                     # (C, H, W), native dtype
    else:
        img3 = img_ref[0, :, pl.ds(row0, Hb), :]              # (C, Hb, W) row band
    img2 = img3.reshape(C * Hb, W)                            # stacked MXU M dim
    s = jnp.dot(img2, wx.astype(img2.dtype),
                preferred_element_type=jnp.float32)           # (C*Hb, tp)
    s = s.reshape(C, Hb, tp)
    out = jnp.sum(s * wy[None, :, :], axis=1)                 # (C, tp), lane-dense
    out_ref[0] = out.astype(out_ref.dtype)


# ----------------------------------------------------------------------------
# Wrapper helpers
# ----------------------------------------------------------------------------
def _round_up(x, m):
    return ((x + m - 1) // m) * m


def _vmem_capacity_bytes():
    try:
        return int(pltpu.get_tpu_info().vmem_capacity_bytes)
    except Exception:
        return 64 << 20          # conservative default (v7x per-TensorCore VMEM)


def _band_rows(tp, W, H, max_flow):
    """Source-row band one destination tile of `tp` flattened pixels can touch."""
    if max_flow is None:
        return H
    margin = int(math.ceil(float(max_flow))) + 1
    span = -(-tp // W) + 1                        # destination rows a tile can span
    return min(H, _round_up(span + 2 * margin, 8))


def backwarp(img, flow, *, max_flow=None, dst_tile=None):
    """I0 = backwarp(I1, F_0_1).

    img : (N, C, H, W)  frame I1 (f32 or bf16; bf16 goes to the MXU natively)
    flow: (N, 2, H, W)  optical flow F_0_1
    max_flow: optional static bound on |flow| in pixels; enables band-limited
        y interpolation (exact as long as the bound holds).
    dst_tile: optional override of the destination-pixel tile size.
    """
    N, C, H, W = img.shape
    assert flow.shape == (N, 2, H, W)
    HW = H * W
    itemsize = jnp.dtype(img.dtype).itemsize

    # -------- VMEM-aware tile selection (lane-dense, multiple of 128) -------
    cap = _vmem_capacity_bytes()
    vmem_limit = min(int(cap * 0.85), cap - (4 << 20))
    img_block_bytes = C * H * W * itemsize
    single_buffer_img = hasattr(pl, "Buffered") and img_block_bytes > (2 << 20)
    img_buffers = 1 if single_buffer_img else 2
    budget = int(vmem_limit * 0.85) - img_buffers * img_block_bytes

    hw128 = _round_up(HW, 128)
    if dst_tile is not None:
        tp = min(_round_up(dst_tile, 128), hw128)
    else:
        tp = 128
        for cand in (8192, 4096, 2048, 1024, 512, 256, 128):
            if cand > hw128:
                continue
            hb = _band_rows(cand, W, H, max_flow)
            # wx/wy/iotas, (C*Hb,tp) matmul result + reshape, small (1,tp) temps,
            # plus double-buffered flow/out blocks.
            per_col = (4 * (2 * W + 2 * hb + 2 * C * hb + 24)
                       + 2 * itemsize * (2 + C))
            if cand * per_col <= budget:
                tp = cand
                break
        tp = min(tp, hw128)
    Hb = _band_rows(tp, W, H, max_flow)

    HW_pad = _round_up(HW, tp)
    num_tiles = HW_pad // tp

    # -------- per-tile source-row band offsets (static -> SMEM prefetch) ----
    if Hb >= H:
        row0 = [0] * num_tiles
    else:
        margin = int(math.ceil(float(max_flow))) + 1
        row0 = [max(0, min((t * tp) // W - margin, H - Hb))
                for t in range(num_tiles)]
    row0 = jnp.asarray(row0, dtype=jnp.int32)

    flow_flat = flow.reshape(N, 2, HW)
    if HW_pad != HW:
        flow_flat = jnp.pad(flow_flat, ((0, 0), (0, 0), (0, HW_pad - HW)))

    img_spec_kwargs = {}
    if single_buffer_img:
        # The frame block index is invariant across the tile axis; double
        # buffering it only wastes VMEM (fatal for f32 HD frames on v7x).
        img_spec_kwargs["pipeline_mode"] = pl.Buffered(1)

    # TODO(synk): for frames whose (banded) block exceeds VMEM, band the img
    # DMA itself (Element-indexed row-band BlockSpec) instead of keeping the
    # full frame resident.
    kernel = functools.partial(_backwarp_kernel, H=H, W=W, tp=tp, Hb=Hb)
    out = pl.pallas_call(
        kernel,
        out_shape=jax.ShapeDtypeStruct((N, C, HW_pad), img.dtype),
        grid_spec=pltpu.PrefetchScalarGridSpec(
            num_scalar_prefetch=1,
            grid=(N, num_tiles),
            in_specs=[
                # Full source frame; block index is constant across the
                # dst-tile axis so it is fetched once per batch element.
                pl.BlockSpec((1, C, H, W), lambda n, t, rs: (n, 0, 0, 0),
                             **img_spec_kwargs),
                pl.BlockSpec((1, 2, tp), lambda n, t, rs: (n, 0, t)),
            ],
            out_specs=pl.BlockSpec((1, C, tp), lambda n, t, rs: (n, 0, t)),
        ),
        compiler_params=pltpu.CompilerParams(
            dimension_semantics=("parallel", "parallel"),
            vmem_limit_bytes=vmem_limit),
    )(row0, img, flow_flat)

    if HW_pad != HW:
        out = out[:, :, :HW]
    return out.reshape(N, C, H, W)


# ----------------------------------------------------------------------------
# Pure-JAX reference (grid_sample: bilinear, zeros padding, align_corners=False)
# ----------------------------------------------------------------------------
def backwarp_ref(img, flow):
    N, C, H, W = img.shape
    gx = jnp.arange(W, dtype=jnp.float32)[None, None, :]   # (1,1,W)
    gy = jnp.arange(H, dtype=jnp.float32)[None, :, None]   # (1,H,1)
    u = flow[:, 0].astype(jnp.float32)
    v = flow[:, 1].astype(jnp.float32)
    ix = gx + u - 0.5
    iy = gy + v - 0.5
    x0 = jnp.floor(ix).astype(jnp.int32)
    y0 = jnp.floor(iy).astype(jnp.int32)
    fx = ix - x0
    fy = iy - y0
    img_flat = img.astype(jnp.float32).reshape(N, C, H * W)

    def sample(xi, yi, w):
        valid = (xi >= 0) & (xi < W) & (yi >= 0) & (yi < H)
        idx = jnp.clip(yi * W + xi, 0, H * W - 1)
        g = jnp.take_along_axis(
            img_flat, idx.reshape(N, 1, H * W), axis=2
        ).reshape(N, C, H, W)
        return g * jnp.where(valid, w, 0.0)[:, None]

    return (sample(x0, y0, (1 - fy) * (1 - fx))
            + sample(x0 + 1, y0, (1 - fy) * fx)
            + sample(x0, y0 + 1, fy * (1 - fx))
            + sample(x0 + 1, y0 + 1, fy * fx))


if __name__ == "__main__":
    key = jax.random.PRNGKey(0)
    k1, k2, k3, k4 = jax.random.split(key, 4)

    # ---- Test 1: small f32 frame, exact path (no band limiting) ------------
    N, C, H, W = 2, 4, 16, 16
    img = jax.random.normal(k1, (N, C, H, W), dtype=jnp.float32)
    flow = 3.0 * jax.random.normal(k2, (N, 2, H, W), dtype=jnp.float32)

    out = jax.block_until_ready(backwarp(img, flow))
    ref = backwarp_ref(img, flow)
    assert out.shape == (N, C, H, W)
    assert jnp.allclose(out, ref, atol=1e-4, rtol=1e-4)

    # ---- Test 2: bf16 frame, band-limited y interpolation + row slicing ----
    N2, C2, H2, W2 = 1, 3, 32, 128
    img2 = jax.random.normal(k3, (N2, C2, H2, W2), dtype=jnp.float32)
    flow2 = jnp.clip(
        3.0 * jax.random.normal(k4, (N2, 2, H2, W2), dtype=jnp.float32),
        -3.0, 3.0)
    img2_bf = img2.astype(jnp.bfloat16)
    flow2_bf = flow2.astype(jnp.bfloat16)

    out2 = jax.block_until_ready(
        backwarp(img2_bf, flow2_bf, max_flow=3.0, dst_tile=128))
    ref2 = backwarp_ref(img2_bf, flow2_bf)
    assert out2.shape == (N2, C2, H2, W2)
    assert jnp.allclose(out2.astype(jnp.float32), ref2, atol=6e-2, rtol=6e-2)

    print("KERNEL_OK")
</pallas_src>

<mosaic_0001>
module attributes {stable_mosaic.version = 11 : i64} {
  func.func @_backwarp_kernel(%arg0: i32, %arg1: i32, %arg2: memref<1xi32, #tpu.memory_space<smem>>, %arg3: memref<1x4x16x16xf32, #tpu.memory_space<vmem>>, %arg4: memref<1x2x256xf32, #tpu.memory_space<vmem>>, %arg5: memref<1x4x256xf32, #tpu.memory_space<vmem>>) attributes {dimension_semantics = [#tpu.dimension_semantics<parallel>, #tpu.dimension_semantics<parallel>], iteration_bounds = array<i64: 2, 1>, scalar_prefetch = 1 : i64, scratch_operands = 0 : i64, tpu.core_type = #tpu.core_type<tc>, window_params = [{transform_indices = @transform_0, window_bounds = array<i64: 1, 4, 16, 16>}, {transform_indices = @transform_1, window_bounds = array<i64: 1, 2, 256>}, {transform_indices = @transform_2, window_bounds = array<i64: 1, 4, 256>}]} {
    %c0 = arith.constant 0 : index
    %c0_0 = arith.constant 0 : index
    %c0_1 = arith.constant 0 : index
    %0 = vector.load %arg4[%c0, %c0_0, %c0_1] : memref<1x2x256xf32, #tpu.memory_space<vmem>>, vector<1x2x256xf32>
    %1 = vector.shape_cast %0 : vector<1x2x256xf32> to vector<2x256xf32>
    %2 = vector.extract_strided_slice %1 {offsets = [0, 0], sizes = [1, 256], strides = [1, 1]} : vector<2x256xf32> to vector<1x256xf32>
    %3 = vector.extract_strided_slice %1 {offsets = [1, 0], sizes = [1, 256], strides = [1, 1]} : vector<2x256xf32> to vector<1x256xf32>
    %4 = tpu.iota {dimensions = array<i32: 1>} : vector<1x256xi32>
    %c256_i32 = arith.constant 256 : i32
    %5 = arith.muli %arg1, %c256_i32 : i32
    %6 = vector.broadcast %5 : i32 to vector<1x256xi32>
    %7 = arith.addi %4, %6 : vector<1x256xi32>
    %8 = arith.sitofp %7 : vector<1x256xi32> to vector<1x256xf32>
    %cst = arith.constant 1.600000e+01 : f32
    %9 = vector.broadcast %cst : f32 to vector<1x256xf32>
    %10 = arith.divf %8, %9 : vector<1x256xf32>
    %11 = math.floor %10 : vector<1x256xf32>
    %cst_2 = arith.constant 1.600000e+01 : f32
    %12 = vector.broadcast %cst_2 : f32 to vector<1x256xf32>
    %13 = arith.mulf %11, %12 : vector<1x256xf32>
    %14 = arith.cmpf ogt, %13, %8 : vector<1x256xf32>
    %cst_3 = arith.constant 1.000000e+00 : f32
    %15 = vector.broadcast %cst_3 : f32 to vector<1x256xf32>
    %16 = arith.subf %11, %15 : vector<1x256xf32>
    %17 = arith.select %14, %16, %11 : vector<1x256xi1>, vector<1x256xf32>
    %cst_4 = arith.constant 1.000000e+00 : f32
    %18 = vector.broadcast %cst_4 : f32 to vector<1x256xf32>
    %19 = arith.addf %17, %18 : vector<1x256xf32>
    %cst_5 = arith.constant 1.600000e+01 : f32
    %20 = vector.broadcast %cst_5 : f32 to vector<1x256xf32>
    %21 = arith.mulf %19, %20 : vector<1x256xf32>
    %22 = arith.cmpf ole, %21, %8 : vector<1x256xf32>
    %cst_6 = arith.constant 1.000000e+00 : f32
    %23 = vector.broadcast %cst_6 : f32 to vector<1x256xf32>
    %24 = arith.addf %17, %23 : vector<1x256xf32>
    %25 = arith.select %22, %24, %17 : vector<1x256xi1>, vector<1x256xf32>
    %cst_7 = arith.constant 1.600000e+01 : f32
    %26 = vector.broadcast %cst_7 : f32 to vector<1x256xf32>
    %27 = arith.mulf %25, %26 : vector<1x256xf32>
    %28 = arith.subf %8, %27 : vector<1x256xf32>
    %29 = arith.addf %28, %2 : vector<1x256xf32>
    %cst_8 = arith.constant 5.000000e-01 : f32
    %30 = vector.broadcast %cst_8 : f32 to vector<1x256xf32>
    %31 = arith.subf %29, %30 : vector<1x256xf32>
    %32 = arith.addf %25, %3 : vector<1x256xf32>
    %cst_9 = arith.constant 5.000000e-01 : f32
    %33 = vector.broadcast %cst_9 : f32 to vector<1x256xf32>
    %34 = arith.subf %32, %33 : vector<1x256xf32>
    %35 = math.floor %31 : vector<1x256xf32>
    %36 = math.floor %34 : vector<1x256xf32>
    %37 = arith.subf %31, %35 : vector<1x256xf32>
    %38 = arith.subf %34, %36 : vector<1x256xf32>
    %39 = arith.fptosi %35 : vector<1x256xf32> to vector<1x256xi32>
    %40 = arith.fptosi %36 : vector<1x256xf32> to vector<1x256xi32>
    %41 = arith.index_cast %arg1 : i32 to index
    %42 = memref.load %arg2[%41] : memref<1xi32, #tpu.memory_space<smem>>
    %43 = tpu.iota {dimensions = array<i32: 0>} : vector<16x256xi32>
    %44 = tpu.iota {dimensions = array<i32: 0>} : vector<16x256xi32>
    %45 = vector.broadcast %42 : i32 to vector<16x256xi32>
    %46 = arith.addi %44, %45 : vector<16x256xi32>
    %47 = vector.broadcast %39 : vector<1x256xi32> to vector<16x256xi32>
    %48 = arith.cmpi eq, %43, %47 : vector<16x256xi32>
    %cst_10 = arith.constant 1.000000e+00 : f32
    %49 = vector.broadcast %cst_10 : f32 to vector<1x256xf32>
    %50 = arith.subf %49, %37 : vector<1x256xf32>
    %c1_i32 = arith.constant 1 : i32
    %51 = vector.broadcast %c1_i32 : i32 to vector<1x256xi32>
    %52 = arith.addi %39, %51 : vector<1x256xi32>
    %53 = vector.broadcast %52 : vector<1x256xi32> to vector<16x256xi32>
    %54 = arith.cmpi eq, %43, %53 : vector<16x256xi32>
    %cst_11 = arith.constant 0.000000e+00 : f32
    %55 = vector.shape_cast %37 : vector<1x256xf32> to vector<1x256xf32>
    %56 = vector.broadcast %55 : vector<1x256xf32> to vector<16x256xf32>
    %57 = vector.broadcast %cst_11 : f32 to vector<16x256xf32>
    %58 = arith.select %54, %56, %57 : vector<16x256xi1>, vector<16x256xf32>
    %59 = vector.shape_cast %50 : vector<1x256xf32> to vector<1x256xf32>
    %60 = vector.broadcast %59 : vector<1x256xf32> to vector<16x256xf32>
    %61 = arith.select %48, %60, %58 : vector<16x256xi1>, vector<16x256xf32>
    %62 = vector.broadcast %40 : vector<1x256xi32> to vector<16x256xi32>
    %63 = arith.cmpi eq, %46, %62 : vector<16x256xi32>
    %cst_12 = arith.constant 1.000000e+00 : f32
    %64 = vector.broadcast %cst_12 : f32 to vector<1x256xf32>
    %65 = arith.subf %64, %38 : vector<1x256xf32>
    %c1_i32_13 = arith.constant 1 : i32
    %66 = vector.broadcast %c1_i32_13 : i32 to vector<1x256xi32>
    %67 = arith.addi %40, %66 : vector<1x256xi32>
    %68 = vector.broadcast %67 : vector<1x256xi32> to vector<16x256xi32>
    %69 = arith.cmpi eq, %46, %68 : vector<16x256xi32>
    %cst_14 = arith.constant 0.000000e+00 : f32
    %70 = vector.shape_cast %38 : vector<1x256xf32> to vector<1x256xf32>
    %71 = vector.broadcast %70 : vector<1x256xf32> to vector<16x256xf32>
    %72 = vector.broadcast %cst_14 : f32 to vector<16x256xf32>
    %73 = arith.select %69, %71, %72 : vector<16x256xi1>, vector<16x256xf32>
    %74 = vector.shape_cast %65 : vector<1x256xf32> to vector<1x256xf32>
    %75 = vector.broadcast %74 : vector<1x256xf32> to vector<16x256xf32>
    %76 = arith.select %63, %75, %73 : vector<16x256xi1>, vector<16x256xf32>
    %c0_15 = arith.constant 0 : index
    %c0_16 = arith.constant 0 : index
    %c0_17 = arith.constant 0 : index
    %c0_18 = arith.constant 0 : index
    %77 = vector.load %arg3[%c0_15, %c0_16, %c0_17, %c0_18] : memref<1x4x16x16xf32, #tpu.memory_space<vmem>>, vector<1x4x16x16xf32>
    %78 = vector.shape_cast %77 : vector<1x4x16x16xf32> to vector<4x16x16xf32>
    %79 = vector.shape_cast %78 : vector<4x16x16xf32> to vector<64x16xf32>
    %cst_19 = arith.constant dense<0.000000e+00> : vector<64x256xf32>
    %80 = tpu.matmul %79, %61, %cst_19 {dimension_numbers = #tpu.dot_dimension_numbers<[1], [0], [0], [1], [0, 0, 1, 1], [], []>} : vector<64x16xf32>, vector<16x256xf32>, vector<64x256xf32> -> vector<64x256xf32>
    %81 = vector.shape_cast %80 : vector<64x256xf32> to vector<4x16x256xf32>
    %82 = vector.shape_cast %76 : vector<16x256xf32> to vector<1x16x256xf32>
    %83 = vector.broadcast %82 : vector<1x16x256xf32> to vector<4x16x256xf32>
    %84 = arith.mulf %81, %83 : vector<4x16x256xf32>
    %cst_20 = arith.constant dense<0.000000e+00> : vector<4x256xf32>
    %85 = vector.multi_reduction <add>, %84, %cst_20 [1] : vector<4x16x256xf32> to vector<4x256xf32>
    %c0_21 = arith.constant 0 : index
    %c0_22 = arith.constant 0 : index
    %c0_23 = arith.constant 0 : index
    %86 = vector.load %arg5[%c0_21, %c0_22, %c0_23] : memref<1x4x256xf32, #tpu.memory_space<vmem>>, vector<1x4x256xf32>
    %87 = vector.shape_cast %86 : vector<1x4x256xf32> to vector<4x256xf32>
    %88 = vector.shape_cast %85 : vector<4x256xf32> to vector<1x4x256xf32>
    tpu.vector_store %arg5[%c0_21, %c0_22, %c0_23], %88 {strides = array<i32>} : memref<1x4x256xf32, #tpu.memory_space<vmem>>, vector<1x4x256xf32>,
    return
  }
  func.func @transform_0(%arg0: i32, %arg1: i32, %arg2: memref<1xi32, #tpu.memory_space<smem>>) -> (i32, i32, i32, i32) {
    %c0_i32 = arith.constant 0 : i32
    %c0_i32_0 = arith.constant 0 : i32
    %c0_i32_1 = arith.constant 0 : i32
    %c0_i32_2 = arith.constant 0 : i32
    return %arg0, %c0_i32, %c0_i32_0, %c0_i32_1 : i32, i32, i32, i32
  }
  func.func @transform_1(%arg0: i32, %arg1: i32, %arg2: memref<1xi32, #tpu.memory_space<smem>>) -> (i32, i32, i32) {
    %c0_i32 = arith.constant 0 : i32
    %c0_i32_0 = arith.constant 0 : i32
    return %arg0, %c0_i32, %arg1 : i32, i32, i32
  }
  func.func @transform_2(%arg0: i32, %arg1: i32, %arg2: memref<1xi32, #tpu.memory_space<smem>>) -> (i32, i32, i32) {
    %c0_i32 = arith.constant 0 : i32
    %c0_i32_0 = arith.constant 0 : i32
    return %arg0, %c0_i32, %arg1 : i32, i32, i32
  }
}

</mosaic_0001>

<llo_original>
// kernel: tpu_custom_call.1
$region0: #{tpu_custom_call.1}
  #allocation0 [shape = 'u32[]', space=smem, size = 0x4, offset = 0x4, fixed_abs, tag = 'smem constant byte address 0x4 - core index']
  #allocation1 [shape = 'u32[72,128]{1,0:T(1,128)}', space=vmem, size = 0x9000, scoped, tag = 'internal scratch']
  #allocation2 [shape = 's32[1]{0}', space=sflag, size = 0x4, scoped, tag = 'scoped memory for tpu_custom_call.1']
  #allocation3 [shape = 's32[1]{0:T(128)S(6)}', space=smem, size = 0x200, scoped, tag = 'prefetched SMEM operand 0']
  %s0 = inlined_call_operand.<no memory space> [shape: s32[1], index: 0, kind: input, shape index: {}]
  %s1 = inlined_call_operand.hbm [shape: f32[2,4,16,16], index: 1, kind: input, shape index: {}]
  %s2 = inlined_call_operand.hbm [shape: f32[2,2,256], index: 2, kind: input, shape index: {}]
  %s3 = inlined_call_operand.hbm [shape: f32[2,4,256], index: 3, kind: output, shape index: {}]
  %s4 = sld [smem:[#allocation0]]
  $region49: #{tpu_custom_call.1} parent=0
    _
  %s6 = ssub.s32 1, %s4
  %s7 = scalar_select 0, %s6, %s4
  %8 = sst [smem:[#allocation3]] %s0
  $region1: #{tpu_custom_call.1} parent=0
    #allocation4 [shape = 'u8[65536]{0}', space=vmem, size = 0x10000, scoped, tag = 'input window, operand 1']
    #allocation5 [shape = 's32[2]{0}', space=sflag, size = 0x8, scoped, tag = 'scoped memory for tpu_custom_call.1']
    #allocation6 [shape = 's32[2]{0}', space=sflag, size = 0x8, scoped, tag = 'scoped memory for tpu_custom_call.1']
    #allocation7 [shape = 'u8[4096]{0}', space=vmem, size = 0x1000, scoped, tag = 'input window, operand 2']
    #allocation8 [shape = 's32[2]{0}', space=sflag, size = 0x8, scoped, tag = 'scoped memory for tpu_custom_call.1']
    #allocation9 [shape = 'u8[8192]{0}', space=vmem, size = 0x2000, scoped, tag = 'output window, operand 0']
    %9 = vsyncpa [#allocation5], 0
    %s10 = scalar_lea.sflag [#allocation5], 1
    %11 = vsyncpa %s10, 0
    %12 = vsyncpa [#allocation8], 0
    %s13 = scalar_lea.sflag [#allocation8], 1
    %14 = vsyncpa %s13, 0
    %15 = vsyncpa [#allocation6], 0
    %s16 = scalar_lea.sflag [#allocation6], 1
    %17 = vsyncpa %s16, 0
    loop: start=0, step=1, limit=4
    $region2: #{tpu_custom_call.1} parent=1 // loop_pre_header
      _
    $region3: #{tpu_custom_call.1} parent=1 // loop_header
      %s19 = sphi 0, %s23
      %p20 = scmp.ge.s32.totalorder %s19, 4
      %s26 = sphi 0, %s38
      %s27 = sphi 0, %s34
      %s28 = sphi 0, %s26
      %s29 = sphi 0, %s27
      %s30 = sphi 0, %s28
      %s31 = sphi 0, %s29
      %s41 = sphi 0, %s43
      %s44 = sphi 0, %s41
      %s45 = sphi 0, %s44
      %s61 = sphi 0, %s45
      %s69 = sphi 0, %s71
      %s72 = sphi 0, %s69
      %s73 = sphi 0, %s72
      %s89 = sphi 0, %s73
      %s97 = sphi 0, %s99
      %s100 = sphi 0, %s97
      %s101 = sphi 0, %s100
      %s117 = sphi 0, %s101
    $region4: #{tpu_custom_call.1} parent=1 // loop_header_branch
      %22 = sbr.rel (%p20) target = $region8
    $region5: #{tpu_custom_call.1} parent=1 // loop_body
      %s24 = ssub.s32 %s19, 1
      %s25 = ssub.s32 %s19, 2
      %s32 = sadd.s32 1, %s27
      %p33 = scmp.ge.s32.totalorder %s32, 1
      %s34 = scalar_select %p33, 0, %s32
      %s35 = sadd.s32 1, %s26
      %s36 = scalar_select %p33, %s35, %s26
      %p37 = scmp.ge.s32.totalorder %s36, 2
      %s38 = scalar_select %p37, 0, %s36
      %s39 = ssub.s32 %s26, %s38
      %p40 = scmp.eq.s32.totalorder %s39, 0
      %s42 = sadd.s32 %s41, 1
      %s43 = scalar_select %p40, %s41, %s42
      %p46 = pneg %p40
      %p47 = scmp.eq.s32.totalorder %s19, 1
      %p48 = por %p46, %p47
      %p49 = scmp.ne.s32.totalorder %s41, %s44
      %p50 = scmp.eq.s32.totalorder %s19, 0
      %p51 = por %p49, %p50
      %p52 = scmp.ne.s32.totalorder %s41, %s44
      %p53 = scmp.eq.s32.totalorder %s24, 1
      %p54 = por %p52, %p53
      %p55 = scmp.ne.s32.totalorder %s44, %s45
      %p56 = scmp.eq.s32.totalorder %s24, 0
      %p57 = por %p55, %p56
      %p58 = scmp.ne.s32.totalorder %s44, %s45
      %p59 = scmp.eq.s32.totalorder %s25, 1
      %p60 = por %p58, %p59
      %p62 = scmp.ne.s32.totalorder %s45, %s61
      %p63 = scmp.eq.s32.totalorder %s25, 0
      %p64 = por %p62, %p63
      %s65 = ssub.s32 %s26, %s38
      %s66 = ssub.s32 %s27, %s34
      %s67 = sor.u32 %s65, %s66
      %p68 = scmp.eq.s32.totalorder %s67, 0
      %s70 = sadd.s32 %s69, 1
      %s71 = scalar_select %p68, %s69, %s70
      %p74 = pneg %p68
      %p75 = scmp.eq.s32.totalorder %s19, 1
      %p76 = por %p74, %p75
      %p77 = scmp.ne.s32.totalorder %s69, %s72
      %p78 = scmp.eq.s32.totalorder %s19, 0
      %p79 = por %p77, %p78
      %p80 = scmp.ne.s32.totalorder %s69, %s72
      %p81 = scmp.eq.s32.totalorder %s24, 1
      %p82 = por %p80, %p81
      %p83 = scmp.ne.s32.totalorder %s72, %s73
      %p84 = scmp.eq.s32.totalorder %s24, 0
      %p85 = por %p83, %p84
      %p86 = scmp.ne.s32.totalorder %s72, %s73
      %p87 = scmp.eq.s32.totalorder %s25, 1
      %p88 = por %p86, %p87
      %p90 = scmp.ne.s32.totalorder %s73, %s89
      %p91 = scmp.eq.s32.totalorder %s25, 0
      %p92 = por %p90, %p91
      %s93 = ssub.s32 %s26, %s38
      %s94 = ssub.s32 %s27, %s34
      %s95 = sor.u32 %s93, %s94
      %p96 = scmp.eq.s32.totalorder %s95, 0
      %s98 = sadd.s32 %s97, 1
      %s99 = scalar_select %p96, %s97, %s98
      %p102 = pneg %p96
      %p103 = scmp.eq.s32.totalorder %s19, 1
      %p104 = por %p102, %p103
      %p105 = scmp.ne.s32.totalorder %s97, %s100
      %p106 = scmp.eq.s32.totalorder %s19, 0
      %p107 = por %p105, %p106
      %p108 = scmp.ne.s32.totalorder %s97, %s100
      %p109 = scmp.eq.s32.totalorder %s24, 1
      %p110 = por %p108, %p109
      %p111 = scmp.ne.s32.totalorder %s100, %s101
      %p112 = scmp.eq.s32.totalorder %s24, 0
      %p113 = por %p111, %p112
      %p114 = scmp.ne.s32.totalorder %s100, %s101
      %p115 = scmp.eq.s32.totalorder %s25, 1
      %p116 = por %p114, %p115
      %p118 = scmp.ne.s32.totalorder %s101, %s117
      %p119 = scmp.eq.s32.totalorder %s25, 0
      %p120 = por %p118, %p119
      %p121 = scmp.le.s32.totalorder 1, %s19
      %p122 = scmp.lt.s32.totalorder %s19, 3
      %p123 = pnand %p121, %p122
      %p124 = pneg %p123
      // Predicated region
      $region9: #{tpu_custom_call.1} parent=5 // pred_check
        _
      $region10: #{tpu_custom_call.1} parent=5 // pred_check_branch
        %126 = sbr.rel (%p123) target = $region12
      $region11: #{tpu_custom_call.1} parent=5 // pred_region
        %s127 = ssub.s32 %s19, 1
      $region12: #{tpu_custom_call.1} parent=5 // pred_fallthru
        _
      %p128 = scmp.lt.s32.totalorder %s19, 2
      // Predicated region
      $region13: #{tpu_custom_call.1} parent=5 // pred_check
        %p129 = pneg %p128
      $region14: #{tpu_custom_call.1} parent=5 // pred_check_branch
        %131 = sbr.rel (%p129) target = $region16
      $region15: #{tpu_custom_call.1} parent=5 // pred_region
        // Predicated region
        $region17: #{tpu_custom_call.1} parent=15 // pred_check
          %p132 = pneg %p51
        $region18: #{tpu_custom_call.1} parent=15 // pred_check_branch
          %134 = sbr.rel (%p132) target = $region20
        $region19: #{tpu_custom_call.1} parent=15 // pred_region
          %s135 = sand.u32 %s41, 1
          %s136 = scalar_lea.sflag [#allocation5], %s135
          %s137 = sand.u32 %s41, 1
          %s138 = smul.addr %s137, 64
          %s139 = scalar_lea.vmem [#allocation4], %s138
          %141 = vsyncadd %s136, 0
          %s142 = smul.addr %s26, 8
          %s143 = smul.addr %s142, 8
          %s144 = scalar_lea.hbm %s1, %s143
          %s145 = sshll.u32 %s144, 4
          %s146 = int_to_ptr.hbm [resolvable:$true] %s145
          %s147 = sshll.u32 %s139, 4
          %s148 = int_to_ptr.vmem [resolvable:$true] %s147
          %153 = dma.hbm_to_vmem [thread:$0]  %s146, 1024, %s148, %s136, 128, 128, 8
        $region20: #{tpu_custom_call.1} parent=15 // pred_fallthru
          _
        // Predicated region
        $region21: #{tpu_custom_call.1} parent=15 // pred_check
          %p154 = pneg %p79
        $region22: #{tpu_custom_call.1} parent=15 // pred_check_branch
          %156 = sbr.rel (%p154) target = $region24
        $region23: #{tpu_custom_call.1} parent=15 // pred_region
          %s157 = sand.u32 %s69, 1
          %s158 = scalar_lea.sflag [#allocation8], %s157
          %s159 = sand.u32 %s69, 1
          %s160 = smul.addr %s159, 4
          %s161 = scalar_lea.vmem [#allocation7], %s160
          %s162 = smul.u32 2, %s27
          %164 = vsyncadd %s158, 0
          %s165 = smul.addr %s26, 2
          %s166 = sadd.s32 %s162, %s165
          %s167 = smul.addr %s166, 2
          %s168 = scalar_lea.hbm %s2, %s167
          %s170 = sshll.u32 %s168, 4
          %s171 = int_to_ptr.hbm [resolvable:$true] %s170
          %s172 = sshll.u32 %s161, 4
          %s173 = int_to_ptr.vmem [resolvable:$true] %s172
          %175 = dma.hbm_to_vmem [thread:$0]  %s171, 64, %s173, %s158
        $region24: #{tpu_custom_call.1} parent=15 // pred_fallthru
          _
      $region16: #{tpu_custom_call.1} parent=5 // pred_fallthru
        _
      %p176 = scmp.le.s32.totalorder 1, %s19
      %p177 = scmp.lt.s32.totalorder %s19, 3
      %p178 = pnand %p176, %p177
      %p179 = pneg %p178
      // Predicated region
      $region25: #{tpu_custom_call.1} parent=5 // pred_check
        _
      $region26: #{tpu_custom_call.1} parent=5 // pred_check_branch
        %181 = sbr.rel (%p178) target = $region28
      $region27: #{tpu_custom_call.1} parent=5 // pred_region
        %s182 = ssub.s32 %s19, 1
        %s183 = sand.u32 %s44, 1
        %s184 = scalar_lea.sflag [#allocation5], %s183
        %s185 = sand.u32 %s44, 1
        %s186 = smul.addr %s185, 64
        %s187 = scalar_lea.vmem [#allocation4], %s186
        // Predicated region
        $region29: #{tpu_custom_call.1} parent=27 // pred_check
          %p188 = pneg %p57
        $region30: #{tpu_custom_call.1} parent=27 // pred_check_branch
          %190 = sbr.rel (%p188) target = $region32
        $region31: #{tpu_custom_call.1} parent=27 // pred_region
          %192 = dma.done %s184, 1024
        $region32: #{tpu_custom_call.1} parent=27 // pred_fallthru
          _
        %s193 = sand.u32 %s72, 1
        %s194 = scalar_lea.sflag [#allocation8], %s193
        %s195 = sand.u32 %s72, 1
        %s196 = smul.addr %s195, 4
        %s197 = scalar_lea.vmem [#allocation7], %s196
        // Predicated region
        $region33: #{tpu_custom_call.1} parent=27 // pred_check
          %p198 = pneg %p85
        $region34: #{tpu_custom_call.1} parent=27 // pred_check_branch
          %200 = sbr.rel (%p198) target = $region36
        $region35: #{tpu_custom_call.1} parent=27 // pred_region
          %202 = dma.done %s194, 64
        $region36: #{tpu_custom_call.1} parent=27 // pred_fallthru
          _
        %s203 = sand.u32 %s44, 1
        %s204 = scalar_lea.sflag [#allocation5], %s203
        %s205 = sand.u32 %s44, 1
        %s206 = smul.addr %s205, 64
        %s207 = scalar_lea.vmem [#allocation4], %s206
        %p208 = pneg %p57
        %p209 = pneg %p54
        %s210 = sand.u32 %s72, 1
        %s211 = scalar_lea.sflag [#allocation8], %s210
        %s212 = sand.u32 %s72, 1
        %s213 = smul.addr %s212, 4
        %s214 = scalar_lea.vmem [#allocation7], %s213
        %p215 = pneg %p85
        %p216 = pneg %p82
        %p217 = pneg %p113
        %p218 = pneg %p110
        %s219 = sand.u32 %s100, 1
        %s220 = scalar_lea.sflag [#allocation6], %s219
        %s221 = sand.u32 %s100, 1
        %s222 = smul.addr %s221, 8
        %s223 = scalar_lea.vmem [#allocation9], %s222
        %s224 = smul.u32 2, %s29
        %s225 = smul.u32 2, %s29
        %v226 = vld [vmem:[%s197] sm:$0xf]
        %v227 = vlaneseq
        %v228 = vand.u32 %v227, 127
        %v229 = vadd.s32 %v228, 128
        %s230 = smul.u32 %s29, 256
        %v231 = vstv %s230
        %v232 = vadd.s32 %v228, %v231
        %v233 = vadd.s32 %v229, %v231
        %v234 = vcvt.s32.f32 %v232
        %v235 = vcvt.s32.f32 %v233
        %v236 = vrcp.pop 16.0
        %v237 = vmul.f32 16.0, %v236
        %v238 = vsub.f32 1.0, %v237
        %v239 = vmul.f32 %v236, %v238
        %v240 = vadd.f32 %v236, %v239
        %vm241 = vweird.f32 %v236
        %v242 = vsel %vm241, %v236, %v240
        %v243 = vmul.f32 %v234, %v242
        %v244 = vmul.f32 %v235, %v242
        %v245 = vfloor.f32 %v243
        %v246 = vfloor.f32 %v244
        %v247 = vmul.f32 %v245, 16.0
        %v248 = vmul.f32 %v246, 16.0
        %vm249 = vcmp.gt.f32.partialorder %v247, %v234
        %vm250 = vcmp.gt.f32.partialorder %v248, %v235
        %v251 = vsub.f32 %v245, 1.0
        %v252 = vsub.f32 %v246, 1.0
        %v253 = vsel %vm249, %v251, %v245
        %v254 = vsel %vm250, %v252, %v246
        %v255 = vadd.f32 %v253, 1.0
        %v256 = vadd.f32 %v254, 1.0
        %v257 = vmul.f32 %v255, 16.0
        %v258 = vmul.f32 %v256, 16.0
        %vm259 = vcmp.le.f32.partialorder %v257, %v234
        %vm260 = vcmp.le.f32.partialorder %v258, %v235
        %v261 = vsel %vm259, %v255, %v253
        %v262 = vsel %vm260, %v256, %v254
        %v263 = vmul.f32 %v261, 16.0
        %v264 = vmul.f32 %v262, 16.0
        %v265 = vsub.f32 %v234, %v263
        %v266 = vsub.f32 %v235, %v264
        %v268 = vperm.slane %v226, 0
        %v269 = vperm.slane %v226, 2
        %v272 = vadd.f32 %v265, %v268
        %v273 = vadd.f32 %v266, %v269
        %v274 = vsub.f32 %v272, 0.5
        %v275 = vsub.f32 %v273, 0.5
        %v276 = vperm.slane %v226, 1
        %v277 = vperm.slane %v226, 3
        %v280 = vadd.f32 %v261, %v276
        %v281 = vadd.f32 %v262, %v277
        %v282 = vsub.f32 %v280, 0.5
        %v283 = vsub.f32 %v281, 0.5
        %v284 = vfloor.f32 %v274
        %v285 = vfloor.f32 %v275
        %v286 = vfloor.f32 %v282
        %v287 = vfloor.f32 %v283
        %v288 = vsub.f32 %v274, %v284
        %v289 = vsub.f32 %v275, %v285
        %v290 = vsub.f32 %v282, %v286
        %v291 = vsub.f32 %v283, %v287
        %v292 = vcvt.f32.s32.to.zero.pseudo %v284
        %v293 = vcvt.f32.s32.to.zero.pseudo %v285
        %v294 = vcvt.f32.s32.to.zero.pseudo %v286
        %v295 = vcvt.f32.s32.to.zero.pseudo %v287
        %s296 = sld [smem:[#allocation3 + %s29]]
        %v297 = vlaneseq
        %v298 = vshrl.u32 %v297, 7
        %v299 = vadd.s32 %v298, 8
        %v300 = vstv %s296
        %v301 = vadd.s32 %v298, %v300
        %v302 = vadd.s32 %v299, %v300
        %v303 = vperm.slane %v292, 0
        %v304 = vperm.slane %v293, 0
        %vm305 = vcmp.eq.s32.totalorder %v298, %v303
        %vm306 = vcmp.eq.s32.totalorder %v298, %v304
        %vm307 = vcmp.eq.s32.totalorder %v299, %v303
        %vm308 = vcmp.eq.s32.totalorder %v299, %v304
        %v309 = vsub.f32 1.0, %v288
        %v310 = vsub.f32 1.0, %v289
        %v311 = vadd.s32 %v292, 1
        %v312 = vadd.s32 %v293, 1
        %v313 = vperm.slane %v311, 0
        %v314 = vperm.slane %v312, 0
        %vm315 = vcmp.eq.s32.totalorder %v298, %v313
        %vm316 = vcmp.eq.s32.totalorder %v298, %v314
        %vm317 = vcmp.eq.s32.totalorder %v299, %v313
        %vm318 = vcmp.eq.s32.totalorder %v299, %v314
        %v319 = vperm.slane %v288, 0
        %v320 = vperm.slane %v289, 0
        %v321 = vsel %vm315, %v319, 0.0
        %v322 = vsel %vm316, %v320, 0.0
        %v323 = vsel %vm317, %v319, 0.0
        %v324 = vsel %vm318, %v320, 0.0
        %v325 = vperm.slane %v309, 0
        %v326 = vperm.slane %v310, 0
        %v327 = vsel %vm305, %v325, %v321
        %v328 = vsel %vm306, %v326, %v322
        %v329 = vsel %vm307, %v325, %v323
        %v330 = vsel %vm308, %v326, %v324
        %v331 = vperm.slane %v294, 0
        %v332 = vperm.slane %v295, 0
        %vm333 = vcmp.eq.s32.totalorder %v301, %v331
        %vm334 = vcmp.eq.s32.totalorder %v301, %v332
        %vm335 = vcmp.eq.s32.totalorder %v302, %v331
        %vm336 = vcmp.eq.s32.totalorder %v302, %v332
        %v337 = vsub.f32 1.0, %v290
        %v338 = vsub.f32 1.0, %v291
        %v339 = vadd.s32 %v294, 1
        %v340 = vadd.s32 %v295, 1
        %v341 = vperm.slane %v339, 0
        %v342 = vperm.slane %v340, 0
        %vm343 = vcmp.eq.s32.totalorder %v301, %v341
        %vm344 = vcmp.eq.s32.totalorder %v301, %v342
        %vm345 = vcmp.eq.s32.totalorder %v302, %v341
        %vm346 = vcmp.eq.s32.totalorder %v302, %v342
        %v347 = vperm.slane %v290, 0
        %v348 = vperm.slane %v291, 0
        %v349 = vsel %vm343, %v347, 0.0
        %v350 = vsel %vm344, %v348, 0.0
        %v351 = vsel %vm345, %v347, 0.0
        %v352 = vsel %vm346, %v348, 0.0
        %v353 = vperm.slane %v337, 0
        %v354 = vperm.slane %v338, 0
        %v355 = vsel %vm333, %v353, %v349
        %v356 = vsel %vm334, %v354, %v350
        %v357 = vsel %vm335, %v353, %v351
        %v358 = vsel %vm336, %v354, %v352
        %v359 = vld [vmem:[%s187] sm:$0xff]
        %v360 = vld [vmem:[%s187 + $0x8] sm:$0xff]
        %v361 = vld [vmem:[%s187 + $0x10] sm:$0xff]
        %v362 = vld [vmem:[%s187 + $0x18] sm:$0xff]
        %v363 = vld [vmem:[%s187 + $0x20] sm:$0xff]
        %v364 = vld [vmem:[%s187 + $0x28] sm:$0xff]
        %v365 = vld [vmem:[%s187 + $0x30] sm:$0xff]
        %v366 = vld [vmem:[%s187 + $0x38] sm:$0xff]
        %vm367 = vcmask 130048
        %v369 = vsel %vm367, %v359, 0
        %v372 = vsel %vm367, %v360, 0
        %v375 = vsel %vm367, %v361, 0
        %v378 = vsel %vm367, %v362, 0
        %v381 = vsel %vm367, %v363, 0
        %v384 = vsel %vm367, %v364, 0
        %v387 = vsel %vm367, %v365, 0
        %v390 = vsel %vm367, %v366, 0
        %392 = vmatpush.msra.mxu0 0.0
        %393 = vmatpush.msra.mxu0 0.0
        %394 = vmatpush.msra.mxu0 0.0
        %395 = vmatpush.msra.mxu0 0.0
        %396 = vmatpush.msra.mxu0 0.0
        %397 = vmatpush.msra.mxu0 0.0
        %398 = vmatpush.msra.mxu0 0.0
        %399 = vmatpush.msra.mxu0 0.0
        %400 = vmatpush.msra.mxu0 0.0
        %401 = vmatpush.msra.mxu0 0.0
        %402 = vmatpush.msra.mxu0 0.0
        %403 = vmatpush.msra.mxu0 0.0
        %404 = vmatpush.msra.mxu0 0.0
        %405 = vmatpush.msra.mxu0 0.0
        %406 = vmatpush.msra.mxu0 %v329
        %407 = vmatpush.msra.mxu0 %v327
        %408 = vmatmul.f32.gmra.mxu0 %v369
        %v409 = vpop.f32.mrf.mxu0
        %v410 = vadd.f32 0.0, %v409
        %411 = vmatmul.f32.gmra.mxu0 %v372
        %v412 = vpop.f32.mrf.mxu0
        %v413 = vadd.f32 0.0, %v412
        %414 = vmatmul.f32.gmra.mxu0 %v375
        %v415 = vpop.f32.mrf.mxu0
        %v416 = vadd.f32 0.0, %v415
        %417 = vmatmul.f32.gmra.mxu0 %v378
        %v418 = vpop.f32.mrf.mxu0
        %v419 = vadd.f32 0.0, %v418
        %420 = vmatmul.f32.gmra.mxu0 %v381
        %v421 = vpop.f32.mrf.mxu0
        %v422 = vadd.f32 0.0, %v421
        %423 = vmatmul.f32.gmra.mxu0 %v384
        %v424 = vpop.f32.mrf.mxu0
        %v425 = vadd.f32 0.0, %v424
        %426 = vmatmul.f32.gmra.mxu0 %v387
        %v427 = vpop.f32.mrf.mxu0
        %v428 = vadd.f32 0.0, %v427
        %429 = vmatmul.f32.gmra.mxu0 %v390
        %v430 = vpop.f32.mrf.mxu0
        %v431 = vadd.f32 0.0, %v430
        %432 = vdwg.mxu0
        %433 = vmatpush.msra.mxu0 0.0
        %434 = vmatpush.msra.mxu0 0.0
        %435 = vmatpush.msra.mxu0 0.0
        %436 = vmatpush.msra.mxu0 0.0
        %437 = vmatpush.msra.mxu0 0.0
        %438 = vmatpush.msra.mxu0 0.0
        %439 = vmatpush.msra.mxu0 0.0
        %440 = vmatpush.msra.mxu0 0.0
        %441 = vmatpush.msra.mxu0 0.0
        %442 = vmatpush.msra.mxu0 0.0
        %443 = vmatpush.msra.mxu0 0.0
        %444 = vmatpush.msra.mxu0 0.0
        %445 = vmatpush.msra.mxu0 0.0
        %446 = vmatpush.msra.mxu0 0.0
        %447 = vmatpush.msra.mxu0 %v330
        %448 = vmatpush.msra.mxu0 %v328
        %449 = vmatmul.f32.gmra.mxu0 %v369
        %v450 = vpop.f32.mrf.mxu0
        %v451 = vadd.f32 0.0, %v450
        %452 = vmatmul.f32.gmra.mxu0 %v372
        %v453 = vpop.f32.mrf.mxu0
        %v454 = vadd.f32 0.0, %v453
        %455 = vmatmul.f32.gmra.mxu0 %v375
        %v456 = vpop.f32.mrf.mxu0
        %v457 = vadd.f32 0.0, %v456
        %458 = vmatmul.f32.gmra.mxu0 %v378
        %v459 = vpop.f32.mrf.mxu0
        %v460 = vadd.f32 0.0, %v459
        %461 = vmatmul.f32.gmra.mxu0 %v381
        %v462 = vpop.f32.mrf.mxu0
        %v463 = vadd.f32 0.0, %v462
        %464 = vmatmul.f32.gmra.mxu0 %v384
        %v465 = vpop.f32.mrf.mxu0
        %v466 = vadd.f32 0.0, %v465
        %467 = vmatmul.f32.gmra.mxu0 %v387
        %v468 = vpop.f32.mrf.mxu0
        %v469 = vadd.f32 0.0, %v468
        %470 = vmatmul.f32.gmra.mxu0 %v390
        %v471 = vpop.f32.mrf.mxu0
        %v472 = vadd.f32 0.0, %v471
        %473 = vdwg.mxu0
        %v474 = vmul.f32 %v410, %v355
        %v475 = vmul.f32 %v451, %v356
        %v476 = vmul.f32 %v413, %v357
        %v477 = vmul.f32 %v454, %v358
        %v478 = vmul.f32 %v416, %v355
        %v479 = vmul.f32 %v457, %v356
        %v480 = vmul.f32 %v419, %v357
        %v481 = vmul.f32 %v460, %v358
        %v482 = vmul.f32 %v422, %v355
        %v483 = vmul.f32 %v463, %v356
        %v484 = vmul.f32 %v425, %v357
        %v485 = vmul.f32 %v466, %v358
        %v486 = vmul.f32 %v428, %v355
        %v487 = vmul.f32 %v469, %v356
        %v488 = vmul.f32 %v431, %v357
        %v489 = vmul.f32 %v472, %v358
        %v490 = vadd.f32 %v474, %v476
        %v491 = vrot.slane %v490, 4
        %v492 = vadd.f32 %v490, %v491
        %v493 = vrot.slane %v492, 2
        %v494 = vadd.f32 %v492, %v493
        %v495 = vrot.slane %v494, 1
        %v496 = vadd.f32 %v494, %v495
        %v497 = vadd.f32 %v475, %v477
        %v498 = vrot.slane %v497, 4
        %v499 = vadd.f32 %v497, %v498
        %v500 = vrot.slane %v499, 2
        %v501 = vadd.f32 %v499, %v500
        %v502 = vrot.slane %v501, 1
        %v503 = vadd.f32 %v501, %v502
        %v504 = vadd.f32 %v478, %v480
        %v505 = vrot.slane %v504, 4
        %v506 = vadd.f32 %v504, %v505
        %v507 = vrot.slane %v506, 2
        %v508 = vadd.f32 %v506, %v507
        %v509 = vrot.slane %v508, 1
        %v510 = vadd.f32 %v508, %v509
        %v511 = vadd.f32 %v479, %v481
        %v512 = vrot.slane %v511, 4
        %v513 = vadd.f32 %v511, %v512
        %v514 = vrot.slane %v513, 2
        %v515 = vadd.f32 %v513, %v514
        %v516 = vrot.slane %v515, 1
        %v517 = vadd.f32 %v515, %v516
        %v518 = vadd.f32 %v482, %v484
        %v519 = vrot.slane %v518, 4
        %v520 = vadd.f32 %v518, %v519
        %v521 = vrot.slane %v520, 2
        %v522 = vadd.f32 %v520, %v521
        %v523 = vrot.slane %v522, 1
        %v524 = vadd.f32 %v522, %v523
        %v525 = vadd.f32 %v483, %v485
        %v526 = vrot.slane %v525, 4
        %v527 = vadd.f32 %v525, %v526
        %v528 = vrot.slane %v527, 2
        %v529 = vadd.f32 %v527, %v528
        %v530 = vrot.slane %v529, 1
        %v531 = vadd.f32 %v529, %v530
        %v532 = vadd.f32 %v486, %v488
        %v533 = vrot.slane %v532, 4
        %v534 = vadd.f32 %v532, %v533
        %v535 = vrot.slane %v534, 2
        %v536 = vadd.f32 %v534, %v535
        %v537 = vrot.slane %v536, 1
        %v538 = vadd.f32 %v536, %v537
        %v539 = vadd.f32 %v487, %v489
        %v540 = vrot.slane %v539, 4
        %v541 = vadd.f32 %v539, %v540
        %v542 = vrot.slane %v541, 2
        %v543 = vadd.f32 %v541, %v542
        %v544 = vrot.slane %v543, 1
        %v545 = vadd.f32 %v543, %v544
        %v554 = vrot.slane %v503, 4
        %v555 = vrot.slane %v517, 4
        %v556 = vrot.slane %v531, 4
        %v557 = vrot.slane %v545, 4
        %vm558 = vcmask 1043456
        %v559 = vsel %vm558, %v496, %v554
        %v560 = vsel %vm558, %v510, %v555
        %v561 = vsel %vm558, %v524, %v556
        %v562 = vsel %vm558, %v538, %v557
        %v563 = vrot.slane %v560, 7
        %vm564 = vcmask 1041409
        %v565 = vsel %vm564, %v563, %v559
        %vm566 = vcmask 1045509
        %v567 = vsel %vm566, %v563, %v565
        %v568 = vrot.slane %v561, 6
        %vm569 = vcmask 1042434
        %v570 = vsel %vm569, %v568, %v567
        %vm571 = vcmask 1046534
        %v572 = vsel %vm571, %v568, %v570
        %v573 = vrot.slane %v562, 5
        %vm574 = vcmask 1043459
        %v575 = vsel %vm574, %v573, %v572
        %vm576 = vcmask 1047559
        %v577 = vsel %vm576, %v573, %v575
        %579 = vst [vmem:[%s223] sm:$0xff] %v577
        %s580 = sand.u32 %s100, 1
        %s581 = scalar_lea.sflag [#allocation6], %s580
        %s582 = sand.u32 %s100, 1
        %s583 = smul.addr %s582, 8
        %s584 = scalar_lea.vmem [#allocation9], %s583
        // Predicated region
        $region37: #{tpu_custom_call.1} parent=27 // pred_check
          %p585 = pneg %p110
        $region38: #{tpu_custom_call.1} parent=27 // pred_check_branch
          %587 = sbr.rel (%p585) target = $region40
        $region39: #{tpu_custom_call.1} parent=27 // pred_region
          %s588 = smul.u32 2, %s29
          %590 = vsyncadd %s581, 0
          %s591 = smul.addr %s28, 2
          %s592 = sadd.s32 %s588, %s591
          %s593 = smul.addr %s592, 4
          %s594 = scalar_lea.hbm %s3, %s593
          %s596 = sshll.u32 %s584, 4
          %s597 = int_to_ptr.vmem [resolvable:$true] %s596
          %s598 = sshll.u32 %s594, 4
          %s599 = int_to_ptr.hbm [resolvable:$true] %s598
          %601 = dma.vmem_to_hbm [thread:$0]  %s597, 128, %s599, %s581
        $region40: #{tpu_custom_call.1} parent=27 // pred_fallthru
          _
      $region28: #{tpu_custom_call.1} parent=5 // pred_fallthru
        _
      %p602 = scmp.le.s32.totalorder 2, %s19
      // Predicated region
      $region41: #{tpu_custom_call.1} parent=5 // pred_check
        %p603 = pneg %p602
      $region42: #{tpu_custom_call.1} parent=5 // pred_check_branch
        %605 = sbr.rel (%p603) target = $region44
      $region43: #{tpu_custom_call.1} parent=5 // pred_region
        %s606 = ssub.s32 %s19, 2
        // Predicated region
        $region45: #{tpu_custom_call.1} parent=43 // pred_check
          %p607 = pneg %p116
        $region46: #{tpu_custom_call.1} parent=43 // pred_check_branch
          %609 = sbr.rel (%p607) target = $region48
        $region47: #{tpu_custom_call.1} parent=43 // pred_region
          %s610 = sand.u32 %s101, 1
          %s611 = scalar_lea.sflag [#allocation6], %s610
          %s612 = sand.u32 %s101, 1
          %s613 = smul.addr %s612, 8
          %s614 = scalar_lea.vmem [#allocation9], %s613
          %616 = dma.done %s611, 128
        $region48: #{tpu_custom_call.1} parent=43 // pred_fallthru
          _
      $region44: #{tpu_custom_call.1} parent=5 // pred_fallthru
        _
    $region6: #{tpu_custom_call.1} parent=1 // loop_footer
      %s23 = sadd.s32 1, %s19
    $region7: #{tpu_custom_call.1} parent=1 // loop_footer_branch
      %18 = sbr.rel target = $region3
    $region8: #{tpu_custom_call.1} parent=1 // loop_exit
      _
    %617 = vsyncpa [#allocation5], 1
    %s618 = scalar_lea.sflag [#allocation5], 1
    %619 = vsyncpa %s618, 1
    %620 = vsyncpa [#allocation8], 1
    %s621 = scalar_lea.sflag [#allocation8], 1
    %622 = vsyncpa %s621, 1
    %623 = vsyncpa [#allocation6], 1
    %s624 = scalar_lea.sflag [#allocation6], 1
    %625 = vsyncpa %s624, 1

</llo_original>
